<compile_context>
chip_gen: v6e
topology: v6e:2x2x1
jax: 0.10.0
libtpu: 0.0.40
codegen_flags: <defaults>
</compile_context>

<pallas_src>
import functools

import jax
import jax.numpy as jnp
from jax.experimental import pallas as pl
from jax.experimental.pallas import tpu as pltpu

LANE = 128                    # TPU lane width; all intermediates are lane-dense.
ROW_W2T = 0                   # rows [0, 128): padded fc2 weight (pre-transposed)
ROW_WN = LANE                 # rows [128, 256): padded, pre-normalized classifier weight
ROW_BF = 2 * LANE             # row 256: fused conv+fc1 bias
ROW_B2 = 2 * LANE + 1         # row 257: fc2 bias
ROW_CB = 2 * LANE + 2         # row 258: softmax lane mask (0 real classes, -1e30 pad)
WB_ROWS = 2 * LANE + 8        # 264 rows (multiple of 8)


def emo_kernel(x_ref, wf_ref, wb_ref, out_ref, *, inv_fc2):
    # ---- fused (Conv1d k=1 + fc1), lane-padded to 128 output features ----
    x = x_ref[...]
    h1 = jnp.dot(x, wf_ref[...], preferred_element_type=jnp.float32)
    h1 = h1 + wb_ref[ROW_BF:ROW_BF + 1, :]
    l1 = jnp.maximum(h1, 0.2 * h1)            # LeakyReLU(0.2); padded lanes stay 0

    # ---- fc2 (lane-padded weight lives in the packed buffer) ----
    h2 = jnp.dot(l1, wb_ref[ROW_W2T:ROW_W2T + LANE, :],
                 preferred_element_type=jnp.float32)
    h2 = h2 + wb_ref[ROW_B2:ROW_B2 + 1, :]
    l2 = jnp.maximum(h2, 0.2 * h2)            # padded lanes stay exactly 0

    # ---- LayerNorm (no affine, eps=1e-5, biased variance) ----
    # Padded lanes are exactly 0, so full-128-lane sums equal the real Fc2 sums.
    # The two reductions are independent (no mean -> center -> var serialization).
    s1 = jnp.sum(l2, axis=-1, keepdims=True)
    s2 = jnp.sum(l2 * l2, axis=-1, keepdims=True)
    mean = s1 * inv_fc2
    var = s2 * inv_fc2 - mean * mean
    normed = (l2 - mean) * jax.lax.rsqrt(var + 1e-5)

    # ---- classifier with pre-normalized weight + lane-dense softmax ----
    # Padded feature rows of the classifier weight are zero, so the garbage
    # LayerNorm values in padded lanes contribute nothing; padded class lanes
    # get a -1e30 additive mask so exp() underflows to 0 in the denominator.
    logits = jnp.dot(normed, wb_ref[ROW_WN:ROW_WN + LANE, :],
                     preferred_element_type=jnp.float32)
    logits = logits + wb_ref[ROW_CB:ROW_CB + 1, :]
    m = jnp.max(logits, axis=-1, keepdims=True)
    e = jnp.exp(logits - m)
    s = jnp.sum(e, axis=-1, keepdims=True)
    out_ref[...] = e * pl.reciprocal(s)


def prepare_params(params):
    """One-time weight preparation (fusion, transposes, normalize, packing). Cache this."""
    wc = params["wc"].astype(jnp.float32)   # (Drc, Di2)
    bc = params["bc"].astype(jnp.float32)   # (Drc,)
    w1 = params["w1"].astype(jnp.float32)   # (Fc1, Drc*Di1), PyTorch (o*Di1+t) order
    b1 = params["b1"].astype(jnp.float32)   # (Fc1,)
    w2 = params["w2"].astype(jnp.float32)   # (Fc2, Fc1)
    b2 = params["b2"].astype(jnp.float32)   # (Fc2,)
    W = params["W"].astype(jnp.float32)     # (C, Fc2)

    Drc, Di2 = wc.shape
    Fc1 = w1.shape[0]
    Di1 = w1.shape[1] // Drc
    Fc2 = w2.shape[0]
    C = W.shape[0]
    K = Di1 * Di2
    assert Fc1 <= LANE and Fc2 <= LANE and C <= LANE

    # Fold the 1x1 conv into fc1 (PyTorch flattens conv output as o*Di1 + t):
    #   wf[t*Di2 + c, f] = sum_o w1[f, o*Di1 + t] * wc[o, c]
    #   bf[f]            = b1[f] + sum_{o,t} w1[f, o*Di1 + t] * bc[o]
    w1_r = w1.reshape(Fc1, Drc, Di1)
    wf = jnp.einsum("fot,oc->tcf", w1_r, wc).reshape(K, Fc1)
    bf = b1 + jnp.einsum("fot,o->f", w1_r, bc)

    # Pad the fused fc1 weight to 128 output lanes (the one "large" weight input).
    wf_pad = jnp.zeros((K, LANE), jnp.float32).at[:, :Fc1].set(wf)

    # Pre-normalize the classifier weight (F.normalize, dim=1).
    row_norm = jnp.sqrt(jnp.sum(W * W, axis=-1, keepdims=True))
    wn = W / jnp.maximum(row_norm, 1e-12)                     # (C, Fc2)

    # Pack every remaining small operand into a single lane-dense VMEM buffer.
    wb = jnp.zeros((WB_ROWS, LANE), jnp.float32)
    wb = wb.at[ROW_W2T:ROW_W2T + Fc1, :Fc2].set(w2.T)         # fc2 weight (transposed)
    wb = wb.at[ROW_WN:ROW_WN + Fc2, :C].set(wn.T)             # classifier weight (normalized, T)
    wb = wb.at[ROW_BF, :Fc1].set(bf)                          # fused bias
    wb = wb.at[ROW_B2, :Fc2].set(b2)                          # fc2 bias
    wb = wb.at[ROW_CB, :].set(jnp.where(jnp.arange(LANE) < C, 0.0, -1e30))

    return {"wf_pad": wf_pad, "wb": wb,
            "num_classes": int(C), "fc2": int(Fc2), "k": int(K)}


def _round_up(a, b):
    return ((a + b - 1) // b) * b


def model_emo_forward(x, prepped):
    """x: (B, Di1, Di2) float32. prepped: output of prepare_params."""
    B, Di1, Di2 = x.shape
    K = prepped["k"]
    C = prepped["num_classes"]
    assert Di1 * Di2 == K

    # Row-major flatten to (B, Di1*Di2) matches the fused weight's (t, c) order.
    x_flat = x.reshape(B, K).astype(jnp.float32)

    # Batch tiling: pad batch to a multiple of the tile (padded rows are sliced
    # off below; they stay finite through the kernel).
    tile_b = 256 if B > 256 else max(_round_up(B, 8), 8)
    bp = _round_up(B, tile_b)
    if bp != B:
        x_flat = jnp.pad(x_flat, ((0, bp - B), (0, 0)))

    kernel = functools.partial(emo_kernel, inv_fc2=1.0 / prepped["fc2"])

    cost = pl.CostEstimate(
        flops=2 * bp * (K * LANE + LANE * LANE + LANE * LANE),
        transcendentals=bp * (LANE + 2),
        bytes_accessed=4 * (bp * K + K * LANE + WB_ROWS * LANE + bp * LANE),
    )

    out = pl.pallas_call(
        kernel,
        out_shape=jax.ShapeDtypeStruct((bp, LANE), jnp.float32),
        grid=(bp // tile_b,),
        in_specs=[
            pl.BlockSpec((tile_b, K), lambda i: (i, 0)),       # x: streamed per batch tile
            pl.BlockSpec((K, LANE), lambda i: (0, 0)),         # fused fc1 weight: resident
            pl.BlockSpec((WB_ROWS, LANE), lambda i: (0, 0)),   # packed small operands: resident
        ],
        out_specs=pl.BlockSpec((tile_b, LANE), lambda i: (i, 0)),
        compiler_params=pltpu.CompilerParams(dimension_semantics=("parallel",)),
        cost_estimate=cost,
    )(x_flat, prepped["wf_pad"], prepped["wb"])

    return out[:B, :C]


def _leaky_relu(x, slope=0.2):
    return jnp.where(x >= 0, x, slope * x)


def reference_forward(x, params):
    """Pure-JAX replica of the PyTorch forward (for correctness check)."""
    wc, bc = params["wc"], params["bc"]
    w1, b1 = params["w1"], params["b1"]
    w2, b2 = params["w2"], params["b2"]
    W = params["W"]
    conv = jnp.einsum("oc,btc->bot", wc, x) + bc[None, :, None]   # (B, Drc, Di1)
    flat = conv.reshape(x.shape[0], -1)                            # (o, t) order
    l1 = _leaky_relu(flat @ w1.T + b1)
    l2 = _leaky_relu(l1 @ w2.T + b2)
    mean = l2.mean(-1, keepdims=True)
    var = ((l2 - mean) ** 2).mean(-1, keepdims=True)
    normed = (l2 - mean) / jnp.sqrt(var + 1e-5)
    wn = W / jnp.maximum(jnp.linalg.norm(W, axis=1, keepdims=True), 1e-12)
    logits = normed @ wn.T
    return jax.nn.softmax(logits, axis=1)


def init_params(key, num_classes=4, Di1=16, Di2=32, Drc=32, Fc1=64, Fc2=64):
    ks = jax.random.split(key, 7)

    def uni(k, shape, bound):
        return jax.random.uniform(k, shape, jnp.float32, -bound, bound)

    return {
        "wc": uni(ks[0], (Drc, Di2), 1.0 / jnp.sqrt(Di2)),
        "bc": uni(ks[1], (Drc,), 1.0 / jnp.sqrt(Di2)),
        "w1": uni(ks[2], (Fc1, Di1 * Drc), 1.0 / jnp.sqrt(Di1 * Drc)),
        "b1": uni(ks[3], (Fc1,), 1.0 / jnp.sqrt(Di1 * Drc)),
        "w2": uni(ks[4], (Fc2, Fc1), 1.0 / jnp.sqrt(Fc1)),
        "b2": uni(ks[5], (Fc2,), 1.0 / jnp.sqrt(Fc1)),
        "W": jax.random.uniform(ks[6], (num_classes, Fc2), jnp.float32, -0.25, 0.25),
    }


if __name__ == "__main__":
    key = jax.random.PRNGKey(0)
    k_params, k_x = jax.random.split(key)

    B, Di1, Di2 = 2, 16, 32
    params = init_params(k_params, num_classes=4, Di1=Di1, Di2=Di2,
                         Drc=32, Fc1=64, Fc2=64)
    x = jax.random.normal(k_x, (B, Di1, Di2), jnp.float32)

    prepped = prepare_params(params)          # one-time weight prep (cacheable)
    out = model_emo_forward(x, prepped)
    out = jax.block_until_ready(out)

    ref = jax.block_until_ready(reference_forward(x, params))
    assert out.shape == (B, 4)
    assert jnp.allclose(out, ref, atol=2e-5, rtol=2e-5), (out, ref)
    assert jnp.allclose(jnp.sum(out, axis=1), 1.0, atol=1e-5)

    print("KERNEL_OK")
</pallas_src>

<mosaic_0001>
module attributes {stable_mosaic.version = 11 : i64} {
  func.func @emo_kernel(%arg0: i32, %arg1: memref<8x512xf32, #tpu.memory_space<vmem>>, %arg2: memref<512x128xf32, #tpu.memory_space<vmem>>, %arg3: memref<264x128xf32, #tpu.memory_space<vmem>>, %arg4: memref<8x128xf32, #tpu.memory_space<vmem>>) attributes {dimension_semantics = [#tpu.dimension_semantics<parallel>], iteration_bounds = array<i64: 1>, scalar_prefetch = 0 : i64, scratch_operands = 0 : i64, tpu.core_type = #tpu.core_type<tc>, window_params = [{transform_indices = @transform_0, window_bounds = array<i64: 8, 512>}, {pipeline_mode = #tpu.pipeline_mode<synchronous>, transform_indices = @transform_1, window_bounds = array<i64: 512, 128>}, {pipeline_mode = #tpu.pipeline_mode<synchronous>, transform_indices = @transform_2, window_bounds = array<i64: 264, 128>}, {transform_indices = @transform_3, window_bounds = array<i64: 8, 128>}]} {
    %c0 = arith.constant 0 : index
    %c0_0 = arith.constant 0 : index
    %0 = vector.load %arg1[%c0, %c0_0] : memref<8x512xf32, #tpu.memory_space<vmem>>, vector<8x512xf32>
    %c0_1 = arith.constant 0 : index
    %c0_2 = arith.constant 0 : index
    %1 = vector.load %arg2[%c0_1, %c0_2] : memref<512x128xf32, #tpu.memory_space<vmem>>, vector<512x128xf32>
    %cst = arith.constant dense<0.000000e+00> : vector<8x128xf32>
    %2 = tpu.matmul %0, %1, %cst {dimension_numbers = #tpu.dot_dimension_numbers<[1], [0], [0], [1], [0, 0, 1, 1], [], []>} : vector<8x512xf32>, vector<512x128xf32>, vector<8x128xf32> -> vector<8x128xf32>
    %c256 = arith.constant 256 : index
    %c0_3 = arith.constant 0 : index
    %3 = vector.load %arg3[%c256, %c0_3] : memref<264x128xf32, #tpu.memory_space<vmem>>, vector<1x128xf32>
    %4 = vector.broadcast %3 : vector<1x128xf32> to vector<8x128xf32>
    %5 = arith.addf %2, %4 : vector<8x128xf32>
    %cst_4 = arith.constant 2.000000e-01 : f32
    %6 = vector.broadcast %cst_4 : f32 to vector<8x128xf32>
    %7 = arith.mulf %6, %5 : vector<8x128xf32>
    %8 = arith.maximumf %5, %7 : vector<8x128xf32>
    %c0_5 = arith.constant 0 : index
    %c0_6 = arith.constant 0 : index
    %9 = vector.load %arg3[%c0_5, %c0_6] : memref<264x128xf32, #tpu.memory_space<vmem>>, vector<128x128xf32>
    %cst_7 = arith.constant dense<0.000000e+00> : vector<8x128xf32>
    %10 = tpu.matmul %8, %9, %cst_7 {dimension_numbers = #tpu.dot_dimension_numbers<[1], [0], [0], [1], [0, 0, 1, 1], [], []>} : vector<8x128xf32>, vector<128x128xf32>, vector<8x128xf32> -> vector<8x128xf32>
    %c257 = arith.constant 257 : index
    %c0_8 = arith.constant 0 : index
    %11 = vector.load %arg3[%c257, %c0_8] : memref<264x128xf32, #tpu.memory_space<vmem>>, vector<1x128xf32>
    %12 = vector.broadcast %11 : vector<1x128xf32> to vector<8x128xf32>
    %13 = arith.addf %10, %12 : vector<8x128xf32>
    %cst_9 = arith.constant 2.000000e-01 : f32
    %14 = vector.broadcast %cst_9 : f32 to vector<8x128xf32>
    %15 = arith.mulf %14, %13 : vector<8x128xf32>
    %16 = arith.maximumf %13, %15 : vector<8x128xf32>
    %cst_10 = arith.constant dense<0.000000e+00> : vector<8xf32>
    %17 = vector.multi_reduction <add>, %16, %cst_10 [1] : vector<8x128xf32> to vector<8xf32>
    %18 = vector.shape_cast %17 : vector<8xf32> to vector<8x1xf32>
    %19 = arith.mulf %16, %16 : vector<8x128xf32>
    %cst_11 = arith.constant dense<0.000000e+00> : vector<8xf32>
    %20 = vector.multi_reduction <add>, %19, %cst_11 [1] : vector<8x128xf32> to vector<8xf32>
    %21 = vector.shape_cast %20 : vector<8xf32> to vector<8x1xf32>
    %cst_12 = arith.constant 1.562500e-02 : f32
    %22 = vector.broadcast %cst_12 : f32 to vector<8x1xf32>
    %23 = arith.mulf %18, %22 : vector<8x1xf32>
    %cst_13 = arith.constant 1.562500e-02 : f32
    %24 = vector.broadcast %cst_13 : f32 to vector<8x1xf32>
    %25 = arith.mulf %21, %24 : vector<8x1xf32>
    %26 = arith.mulf %23, %23 : vector<8x1xf32>
    %27 = arith.subf %25, %26 : vector<8x1xf32>
    %28 = vector.broadcast %23 : vector<8x1xf32> to vector<8x128xf32>
    %29 = arith.subf %16, %28 : vector<8x128xf32>
    %cst_14 = arith.constant 9.99999974E-6 : f32
    %30 = vector.broadcast %cst_14 : f32 to vector<8x1xf32>
    %31 = arith.addf %27, %30 : vector<8x1xf32>
    %32 = math.rsqrt %31 : vector<8x1xf32>
    %33 = vector.broadcast %32 : vector<8x1xf32> to vector<8x128xf32>
    %34 = arith.mulf %29, %33 : vector<8x128xf32>
    %c128 = arith.constant 128 : index
    %c0_15 = arith.constant 0 : index
    %35 = vector.load %arg3[%c128, %c0_15] : memref<264x128xf32, #tpu.memory_space<vmem>>, vector<128x128xf32>
    %cst_16 = arith.constant dense<0.000000e+00> : vector<8x128xf32>
    %36 = tpu.matmul %34, %35, %cst_16 {dimension_numbers = #tpu.dot_dimension_numbers<[1], [0], [0], [1], [0, 0, 1, 1], [], []>} : vector<8x128xf32>, vector<128x128xf32>, vector<8x128xf32> -> vector<8x128xf32>
    %c258 = arith.constant 258 : index
    %c0_17 = arith.constant 0 : index
    %37 = vector.load %arg3[%c258, %c0_17] : memref<264x128xf32, #tpu.memory_space<vmem>>, vector<1x128xf32>
    %38 = vector.broadcast %37 : vector<1x128xf32> to vector<8x128xf32>
    %39 = arith.addf %36, %38 : vector<8x128xf32>
    %cst_18 = arith.constant dense<0xFF800000> : vector<8xf32>
    %40 = vector.multi_reduction <maximumf>, %39, %cst_18 [1] : vector<8x128xf32> to vector<8xf32>
    %41 = vector.shape_cast %40 : vector<8xf32> to vector<8x1xf32>
    %42 = vector.broadcast %41 : vector<8x1xf32> to vector<8x128xf32>
    %43 = arith.subf %39, %42 : vector<8x128xf32>
    %44 = math.exp %43 : vector<8x128xf32>
    %cst_19 = arith.constant dense<0.000000e+00> : vector<8xf32>
    %45 = vector.multi_reduction <add>, %44, %cst_19 [1] : vector<8x128xf32> to vector<8xf32>
    %46 = vector.shape_cast %45 : vector<8xf32> to vector<8x1xf32>
    %47 = tpu.reciprocal %46 : vector<8x1xf32> -> vector<8x1xf32>
    %48 = vector.broadcast %47 : vector<8x1xf32> to vector<8x128xf32>
    %49 = arith.mulf %44, %48 : vector<8x128xf32>
    %c0_20 = arith.constant 0 : index
    %c0_21 = arith.constant 0 : index
    %50 = vector.load %arg4[%c0_20, %c0_21] : memref<8x128xf32, #tpu.memory_space<vmem>>, vector<8x128xf32>
    tpu.vector_store %arg4[%c0_20, %c0_21], %49 {strides = array<i32>} : memref<8x128xf32, #tpu.memory_space<vmem>>, vector<8x128xf32>,
    return
  }
  func.func @transform_0(%arg0: i32) -> (i32, i32) {
    %c0_i32 = arith.constant 0 : i32
    %c0_i32_0 = arith.constant 0 : i32
    return %arg0, %c0_i32 : i32, i32
  }
  func.func @transform_1(%arg0: i32) -> (i32, i32) {
    %c0_i32 = arith.constant 0 : i32
    %c0_i32_0 = arith.constant 0 : i32
    %c0_i32_1 = arith.constant 0 : i32
    return %c0_i32, %c0_i32_0 : i32, i32
  }
  func.func @transform_2(%arg0: i32) -> (i32, i32) {
    %c0_i32 = arith.constant 0 : i32
    %c0_i32_0 = arith.constant 0 : i32
    %c0_i32_1 = arith.constant 0 : i32
    return %c0_i32, %c0_i32_0 : i32, i32
  }
  func.func @transform_3(%arg0: i32) -> (i32, i32) {
    %c0_i32 = arith.constant 0 : i32
    %c0_i32_0 = arith.constant 0 : i32
    return %arg0, %c0_i32 : i32, i32
  }
}

</mosaic_0001>

<llo_original>
// kernel: tpu_custom_call.1
$region0: #{tpu_custom_call.1}
  #allocation0 [shape = 'u32[]', space=smem, size = 0x4, offset = 0x4, fixed_abs, tag = 'smem constant byte address 0x4 - core index']
  #allocation1 [shape = 'u32[144,128]{1,0:T(1,128)}', space=vmem, size = 0x12000, scoped, tag = 'internal scratch']
  %s0 = inlined_call_operand.hbm [shape: f32[8,512], index: 0, kind: input, shape index: {}]
  %s1 = inlined_call_operand.hbm [shape: f32[512,128], index: 1, kind: input, shape index: {}]
  %s2 = inlined_call_operand.hbm [shape: f32[264,128], index: 2, kind: input, shape index: {}]
  %s3 = inlined_call_operand.hbm [shape: f32[8,128], index: 3, kind: output, shape index: {}]
  %s4 = sld [smem:[#allocation0]]
  $region34: #{tpu_custom_call.1} parent=0
    _
  %s6 = ssub.s32 1, %s4
  %s7 = scalar_select 0, %s6, %s4
  $region1: #{tpu_custom_call.1} parent=0
    #allocation2 [shape = 'u8[16384]{0}', space=vmem, size = 0x4000, scoped, tag = 'input window, operand 0, single buffered']
    #allocation3 [shape = 's32[1]{0}', space=sflag, size = 0x4, scoped, tag = 'scoped memory for tpu_custom_call.1']
    #allocation4 [shape = 's32[1]{0}', space=sflag, size = 0x4, scoped, tag = 'scoped memory for tpu_custom_call.1']
    #allocation5 [shape = 'u8[262144]{0}', space=vmem, size = 0x40000, scoped, tag = 'input window, operand 1, single buffered']
    #allocation6 [shape = 's32[1]{0}', space=sflag, size = 0x4, scoped, tag = 'scoped memory for tpu_custom_call.1']
    #allocation7 [shape = 'u8[135168]{0}', space=vmem, size = 0x21000, scoped, tag = 'input window, operand 2, single buffered']
    #allocation8 [shape = 'u8[4096]{0}', space=vmem, size = 0x1000, scoped, tag = 'output window, operand 0, single buffered']
    %8 = vsyncpa [#allocation3], 0
    %9 = vsyncpa [#allocation6], 0
    %10 = vsyncpa [#allocation4], 0
    // Predicated region
    $region2: #{tpu_custom_call.1} parent=1 // pred_check
      _
    $region3: #{tpu_custom_call.1} parent=1 // pred_check_branch
      %12 = sbr.rel (0) target = $region5
    $region4: #{tpu_custom_call.1} parent=1 // pred_region
      %s14 = ssub.s32 512, 512
      %15 = vsyncadd [#allocation3], %s14
      %s17 = sshll.u32 [#allocation2], 4
      %s18 = int_to_ptr.vmem [resolvable:$true] %s17
      %20 = dma.hbm_to_vmem [thread:$0]  %s0, 512, %s18, [#allocation3]
    $region5: #{tpu_custom_call.1} parent=1 // pred_fallthru
      _
    // Predicated region
    $region6: #{tpu_custom_call.1} parent=1 // pred_check
      _
    $region7: #{tpu_custom_call.1} parent=1 // pred_check_branch
      %22 = sbr.rel (0) target = $region9
    $region8: #{tpu_custom_call.1} parent=1 // pred_region
      %s24 = ssub.s32 8192, 8192
      %25 = vsyncadd [#allocation6], %s24
      %s26 = sshll.u32 [#allocation5], 4
      %s27 = int_to_ptr.vmem [resolvable:$true] %s26
      %32 = dma.hbm_to_vmem [thread:$0]  %s1, 8192, %s27, [#allocation6], 128, 128, 8
    $region9: #{tpu_custom_call.1} parent=1 // pred_fallthru
      _
    // Predicated region
    $region10: #{tpu_custom_call.1} parent=1 // pred_check
      _
    $region11: #{tpu_custom_call.1} parent=1 // pred_check_branch
      %34 = sbr.rel (0) target = $region13
    $region12: #{tpu_custom_call.1} parent=1 // pred_region
      %s36 = ssub.s32 4224, 4224
      %37 = vsyncadd [#allocation6], %s36
      %s38 = sshll.u32 [#allocation7], 4
      %s39 = int_to_ptr.vmem [resolvable:$true] %s38
      %44 = dma.hbm_to_vmem [thread:$0]  %s2, 4224, %s39, [#allocation6], 128, 128, 8
    $region13: #{tpu_custom_call.1} parent=1 // pred_fallthru
      _
    // Predicated region
    $region14: #{tpu_custom_call.1} parent=1 // pred_check
      _
    $region15: #{tpu_custom_call.1} parent=1 // pred_check_branch
      %46 = sbr.rel (0) target = $region17
    $region16: #{tpu_custom_call.1} parent=1 // pred_region
      %47 = dma.done [#allocation3], 512
    $region17: #{tpu_custom_call.1} parent=1 // pred_fallthru
      _
    // Predicated region
    $region18: #{tpu_custom_call.1} parent=1 // pred_check
      _
    $region19: #{tpu_custom_call.1} parent=1 // pred_check_branch
      %49 = sbr.rel (0) target = $region21
    $region20: #{tpu_custom_call.1} parent=1 // pred_region
      %50 = dma.done [#allocation6], 8192
    $region21: #{tpu_custom_call.1} parent=1 // pred_fallthru
      _
    // Predicated region
    $region22: #{tpu_custom_call.1} parent=1 // pred_check
      _
    $region23: #{tpu_custom_call.1} parent=1 // pred_check_branch
      %52 = sbr.rel (0) target = $region25
    $region24: #{tpu_custom_call.1} parent=1 // pred_region
      %53 = dma.done [#allocation6], 4224
    $region25: #{tpu_custom_call.1} parent=1 // pred_fallthru
      _
    %v54 = vld [vmem:[#allocation2] sm:$0xff]
    %v55 = vld [vmem:[#allocation2 + $0x8] sm:$0xff]
    %v56 = vld [vmem:[#allocation2 + $0x10] sm:$0xff]
    %v57 = vld [vmem:[#allocation2 + $0x18] sm:$0xff]
    %v58 = vld [vmem:[#allocation5] sm:$0xff]
    %v59 = vld [vmem:[#allocation5 + $0x8] sm:$0xff]
    %v60 = vld [vmem:[#allocation5 + $0x10] sm:$0xff]
    %v61 = vld [vmem:[#allocation5 + $0x18] sm:$0xff]
    %v62 = vld [vmem:[#allocation5 + $0x20] sm:$0xff]
    %v63 = vld [vmem:[#allocation5 + $0x28] sm:$0xff]
    %v64 = vld [vmem:[#allocation5 + $0x30] sm:$0xff]
    %v65 = vld [vmem:[#allocation5 + $0x38] sm:$0xff]
    %v66 = vld [vmem:[#allocation5 + $0x40] sm:$0xff]
    %v67 = vld [vmem:[#allocation5 + $0x48] sm:$0xff]
    %v68 = vld [vmem:[#allocation5 + $0x50] sm:$0xff]
    %v69 = vld [vmem:[#allocation5 + $0x58] sm:$0xff]
    %v70 = vld [vmem:[#allocation5 + $0x60] sm:$0xff]
    %v71 = vld [vmem:[#allocation5 + $0x68] sm:$0xff]
    %v72 = vld [vmem:[#allocation5 + $0x70] sm:$0xff]
    %v73 = vld [vmem:[#allocation5 + $0x78] sm:$0xff]
    %v74 = vld [vmem:[#allocation5 + $0x80] sm:$0xff]
    %v75 = vld [vmem:[#allocation5 + $0x88] sm:$0xff]
    %v76 = vld [vmem:[#allocation5 + $0x90] sm:$0xff]
    %v77 = vld [vmem:[#allocation5 + $0x98] sm:$0xff]
    %v78 = vld [vmem:[#allocation5 + $0xa0] sm:$0xff]
    %v79 = vld [vmem:[#allocation5 + $0xa8] sm:$0xff]
    %v80 = vld [vmem:[#allocation5 + $0xb0] sm:$0xff]
    %v81 = vld [vmem:[#allocation5 + $0xb8] sm:$0xff]
    %v82 = vld [vmem:[#allocation5 + $0xc0] sm:$0xff]
    %v83 = vld [vmem:[#allocation5 + $0xc8] sm:$0xff]
    %v84 = vld [vmem:[#allocation5 + $0xd0] sm:$0xff]
    %v85 = vld [vmem:[#allocation5 + $0xd8] sm:$0xff]
    %v86 = vld [vmem:[#allocation5 + $0xe0] sm:$0xff]
    %v87 = vld [vmem:[#allocation5 + $0xe8] sm:$0xff]
    %v88 = vld [vmem:[#allocation5 + $0xf0] sm:$0xff]
    %v89 = vld [vmem:[#allocation5 + $0xf8] sm:$0xff]
    %v90 = vld [vmem:[#allocation5 + $0x100] sm:$0xff]
    %v91 = vld [vmem:[#allocation5 + $0x108] sm:$0xff]
    %v92 = vld [vmem:[#allocation5 + $0x110] sm:$0xff]
    %v93 = vld [vmem:[#allocation5 + $0x118] sm:$0xff]
    %v94 = vld [vmem:[#allocation5 + $0x120] sm:$0xff]
    %v95 = vld [vmem:[#allocation5 + $0x128] sm:$0xff]
    %v96 = vld [vmem:[#allocation5 + $0x130] sm:$0xff]
    %v97 = vld [vmem:[#allocation5 + $0x138] sm:$0xff]
    %v98 = vld [vmem:[#allocation5 + $0x140] sm:$0xff]
    %v99 = vld [vmem:[#allocation5 + $0x148] sm:$0xff]
    %v100 = vld [vmem:[#allocation5 + $0x150] sm:$0xff]
    %v101 = vld [vmem:[#allocation5 + $0x158] sm:$0xff]
    %v102 = vld [vmem:[#allocation5 + $0x160] sm:$0xff]
    %v103 = vld [vmem:[#allocation5 + $0x168] sm:$0xff]
    %v104 = vld [vmem:[#allocation5 + $0x170] sm:$0xff]
    %v105 = vld [vmem:[#allocation5 + $0x178] sm:$0xff]
    %v106 = vld [vmem:[#allocation5 + $0x180] sm:$0xff]
    %v107 = vld [vmem:[#allocation5 + $0x188] sm:$0xff]
    %v108 = vld [vmem:[#allocation5 + $0x190] sm:$0xff]
    %v109 = vld [vmem:[#allocation5 + $0x198] sm:$0xff]
    %v110 = vld [vmem:[#allocation5 + $0x1a0] sm:$0xff]
    %v111 = vld [vmem:[#allocation5 + $0x1a8] sm:$0xff]
    %v112 = vld [vmem:[#allocation5 + $0x1b0] sm:$0xff]
    %v113 = vld [vmem:[#allocation5 + $0x1b8] sm:$0xff]
    %v114 = vld [vmem:[#allocation5 + $0x1c0] sm:$0xff]
    %v115 = vld [vmem:[#allocation5 + $0x1c8] sm:$0xff]
    %v116 = vld [vmem:[#allocation5 + $0x1d0] sm:$0xff]
    %v117 = vld [vmem:[#allocation5 + $0x1d8] sm:$0xff]
    %v118 = vld [vmem:[#allocation5 + $0x1e0] sm:$0xff]
    %v119 = vld [vmem:[#allocation5 + $0x1e8] sm:$0xff]
    %v120 = vld [vmem:[#allocation5 + $0x1f0] sm:$0xff]
    %v121 = vld [vmem:[#allocation5 + $0x1f8] sm:$0xff]
    %v122 = vld [vmem:[#allocation7 + $0x100] sm:$0x1]
    %v123 = vlaneseq
    %v124 = vshrl.u32 %v123, 7
    %v125 = vsub.s32 0, %v124
    %v126 = vrot.slane %v122, %v125
    %127 = vmatprep.subr.mxu0 0.0
    %128 = vmatpush1.msra.mxu0 %v73
    %129 = vmatprep.subr.mxu0 0.0
    %130 = vmatpush1.msra.mxu0 %v72
    %131 = vmatprep.subr.mxu0 0.0
    %132 = vmatpush1.msra.mxu0 %v71
    %133 = vmatprep.subr.mxu0 0.0
    %134 = vmatpush1.msra.mxu0 %v70
    %135 = vmatprep.subr.mxu0 0.0
    %136 = vmatpush1.msra.mxu0 %v69
    %137 = vmatprep.subr.mxu0 0.0
    %138 = vmatpush1.msra.mxu0 %v68
    %139 = vmatprep.subr.mxu0 0.0
    %140 = vmatpush1.msra.mxu0 %v67
    %141 = vmatprep.subr.mxu0 0.0
    %142 = vmatpush1.msra.mxu0 %v66
    %143 = vmatprep.subr.mxu0 0.0
    %144 = vmatpush1.msra.mxu0 %v65
    %145 = vmatprep.subr.mxu0 0.0
    %146 = vmatpush1.msra.mxu0 %v64
    %147 = vmatprep.subr.mxu0 0.0
    %148 = vmatpush1.msra.mxu0 %v63
    %149 = vmatprep.subr.mxu0 0.0
    %150 = vmatpush1.msra.mxu0 %v62
    %151 = vmatprep.subr.mxu0 0.0
    %152 = vmatpush1.msra.mxu0 %v61
    %153 = vmatprep.subr.mxu0 0.0
    %154 = vmatpush1.msra.mxu0 %v60
    %155 = vmatprep.subr.mxu0 0.0
    %156 = vmatpush1.msra.mxu0 %v59
    %157 = vmatprep.subr.mxu0 0.0
    %158 = vmatpush1.msra.mxu0 %v58
    %159 = vmatprep.subr.mxu0 0.0
    %160 = vmatpush2.msra.mxu0 %v89
    %161 = vmatprep.subr.mxu0 0.0
    %162 = vmatpush2.msra.mxu0 %v88
    %163 = vmatprep.subr.mxu0 0.0
    %164 = vmatpush2.msra.mxu0 %v87
    %165 = vmatprep.subr.mxu0 0.0
    %166 = vmatpush2.msra.mxu0 %v86
    %167 = vmatprep.subr.mxu0 0.0
    %168 = vmatpush2.msra.mxu0 %v85
    %169 = vmatprep.subr.mxu0 0.0
    %170 = vmatpush2.msra.mxu0 %v84
    %171 = vmatprep.subr.mxu0 0.0
    %172 = vmatpush2.msra.mxu0 %v83
    %173 = vmatprep.subr.mxu0 0.0
    %174 = vmatpush2.msra.mxu0 %v82
    %175 = vmatprep.subr.mxu0 0.0
    %176 = vmatpush2.msra.mxu0 %v81
    %177 = vmatprep.subr.mxu0 0.0
    %178 = vmatpush2.msra.mxu0 %v80
    %179 = vmatprep.subr.mxu0 0.0
    %180 = vmatpush2.msra.mxu0 %v79
    %181 = vmatprep.subr.mxu0 0.0
    %182 = vmatpush2.msra.mxu0 %v78
    %183 = vmatprep.subr.mxu0 0.0
    %184 = vmatpush2.msra.mxu0 %v77
    %185 = vmatprep.subr.mxu0 0.0
    %186 = vmatpush2.msra.mxu0 %v76
    %187 = vmatprep.subr.mxu0 0.0
    %188 = vmatpush2.msra.mxu0 %v75
    %189 = vmatprep.subr.mxu0 0.0
    %190 = vmatpush2.msra.mxu0 %v74
    %191 = vmatprep.mubr.f32.mxu0 %v55
    %192 = vmatmul.mubr.f32.gmra.mxu0 %v54
    %v193 = vpop.f32.mrf.mxu0
    %v194 = vadd.f32 %v126, %v193
    %v195 = vpop.f32.mrf.mxu0
    %196 = vdwg.mxu0
    %197 = vmatprep.subr.mxu0 0.0
    %198 = vmatpush1.msra.mxu0 %v105
    %199 = vmatprep.subr.mxu0 0.0
    %200 = vmatpush1.msra.mxu0 %v104
    %201 = vmatprep.subr.mxu0 0.0
    %202 = vmatpush1.msra.mxu0 %v103
    %203 = vmatprep.subr.mxu0 0.0
    %204 = vmatpush1.msra.mxu0 %v102
    %205 = vmatprep.subr.mxu0 0.0
    %206 = vmatpush1.msra.mxu0 %v101
    %207 = vmatprep.subr.mxu0 0.0
    %208 = vmatpush1.msra.mxu0 %v100
    %209 = vmatprep.subr.mxu0 0.0
    %210 = vmatpush1.msra.mxu0 %v99
    %211 = vmatprep.subr.mxu0 0.0
    %212 = vmatpush1.msra.mxu0 %v98
    %213 = vmatprep.subr.mxu0 0.0
    %214 = vmatpush1.msra.mxu0 %v97
    %215 = vmatprep.subr.mxu0 0.0
    %216 = vmatpush1.msra.mxu0 %v96
    %217 = vmatprep.subr.mxu0 0.0
    %218 = vmatpush1.msra.mxu0 %v95
    %219 = vmatprep.subr.mxu0 0.0
    %220 = vmatpush1.msra.mxu0 %v94
    %221 = vmatprep.subr.mxu0 0.0
    %222 = vmatpush1.msra.mxu0 %v93
    %223 = vmatprep.subr.mxu0 0.0
    %224 = vmatpush1.msra.mxu0 %v92
    %225 = vmatprep.subr.mxu0 0.0
    %226 = vmatpush1.msra.mxu0 %v91
    %227 = vmatprep.subr.mxu0 0.0
    %228 = vmatpush1.msra.mxu0 %v90
    %229 = vmatprep.subr.mxu0 0.0
    %230 = vmatpush2.msra.mxu0 %v121
    %231 = vmatprep.subr.mxu0 0.0
    %232 = vmatpush2.msra.mxu0 %v120
    %233 = vmatprep.subr.mxu0 0.0
    %234 = vmatpush2.msra.mxu0 %v119
    %235 = vmatprep.subr.mxu0 0.0
    %236 = vmatpush2.msra.mxu0 %v118
    %237 = vmatprep.subr.mxu0 0.0
    %238 = vmatpush2.msra.mxu0 %v117
    %239 = vmatprep.subr.mxu0 0.0
    %240 = vmatpush2.msra.mxu0 %v116
    %241 = vmatprep.subr.mxu0 0.0
    %242 = vmatpush2.msra.mxu0 %v115
    %243 = vmatprep.subr.mxu0 0.0
    %244 = vmatpush2.msra.mxu0 %v114
    %245 = vmatprep.subr.mxu0 0.0
    %246 = vmatpush2.msra.mxu0 %v113
    %247 = vmatprep.subr.mxu0 0.0
    %248 = vmatpush2.msra.mxu0 %v112
    %249 = vmatprep.subr.mxu0 0.0
    %250 = vmatpush2.msra.mxu0 %v111
    %251 = vmatprep.subr.mxu0 0.0
    %252 = vmatpush2.msra.mxu0 %v110
    %253 = vmatprep.subr.mxu0 0.0
    %254 = vmatpush2.msra.mxu0 %v109
    %255 = vmatprep.subr.mxu0 0.0
    %256 = vmatpush2.msra.mxu0 %v108
    %257 = vmatprep.subr.mxu0 0.0
    %258 = vmatpush2.msra.mxu0 %v107
    %259 = vmatprep.subr.mxu0 0.0
    %260 = vmatpush2.msra.mxu0 %v106
    %261 = vmatprep.mubr.f32.mxu0 %v57
    %262 = vmatmul.mubr.f32.gmra.mxu0 %v56
    %v263 = vpop.f32.mrf.mxu0
    %v264 = vadd.f32 %v194, %v263
    %v265 = vpop.f32.mrf.mxu0
    %266 = vdwg.mxu0
    %v267 = vmul.f32 %v264, 0.2
    %v268 = vmax.f32 %v264, %v267
    %v269 = vld [vmem:[#allocation7] sm:$0xff]
    %v270 = vld [vmem:[#allocation7 + $0x8] sm:$0xff]
    %v271 = vld [vmem:[#allocation7 + $0x10] sm:$0xff]
    %v272 = vld [vmem:[#allocation7 + $0x18] sm:$0xff]
    %v273 = vld [vmem:[#allocation7 + $0x20] sm:$0xff]
    %v274 = vld [vmem:[#allocation7 + $0x28] sm:$0xff]
    %v275 = vld [vmem:[#allocation7 + $0x30] sm:$0xff]
    %v276 = vld [vmem:[#allocation7 + $0x38] sm:$0xff]
    %v277 = vld [vmem:[#allocation7 + $0x40] sm:$0xff]
    %v278 = vld [vmem:[#allocation7 + $0x48] sm:$0xff]
    %v279 = vld [vmem:[#allocation7 + $0x50] sm:$0xff]
    %v280 = vld [vmem:[#allocation7 + $0x58] sm:$0xff]
    %v281 = vld [vmem:[#allocation7 + $0x60] sm:$0xff]
    %v282 = vld [vmem:[#allocation7 + $0x68] sm:$0xff]
    %v283 = vld [vmem:[#allocation7 + $0x70] sm:$0xff]
    %v284 = vld [vmem:[#allocation7 + $0x78] sm:$0xff]
    %v285 = vld [vmem:[#allocation7 + $0x101] sm:$0x1]
    %v286 = vlaneseq
    %v287 = vshrl.u32 %v286, 7
    %v288 = vsub.s32 0, %v287
    %v289 = vrot.slane %v285, %v288
    %290 = vmatprep.subr.mxu0 0.0
    %291 = vmatpush1.msra.mxu0 %v284
    %292 = vmatprep.subr.mxu0 0.0
    %293 = vmatpush1.msra.mxu0 %v283
    %294 = vmatprep.subr.mxu0 0.0
    %295 = vmatpush1.msra.mxu0 %v282
    %296 = vmatprep.subr.mxu0 0.0
    %297 = vmatpush1.msra.mxu0 %v281
    %298 = vmatprep.subr.mxu0 0.0
    %299 = vmatpush1.msra.mxu0 %v280
    %300 = vmatprep.subr.mxu0 0.0
    %301 = vmatpush1.msra.mxu0 %v279
    %302 = vmatprep.subr.mxu0 0.0
    %303 = vmatpush1.msra.mxu0 %v278
    %304 = vmatprep.subr.mxu0 0.0
    %305 = vmatpush1.msra.mxu0 %v277
    %306 = vmatprep.subr.mxu0 0.0
    %307 = vmatpush1.msra.mxu0 %v276
    %308 = vmatprep.subr.mxu0 0.0
    %309 = vmatpush1.msra.mxu0 %v275
    %310 = vmatprep.subr.mxu0 0.0
    %311 = vmatpush1.msra.mxu0 %v274
    %312 = vmatprep.subr.mxu0 0.0
    %313 = vmatpush1.msra.mxu0 %v273
    %314 = vmatprep.subr.mxu0 0.0
    %315 = vmatpush1.msra.mxu0 %v272
    %316 = vmatprep.subr.mxu0 0.0
    %317 = vmatpush1.msra.mxu0 %v271
    %318 = vmatprep.subr.mxu0 0.0
    %319 = vmatpush1.msra.mxu0 %v270
    %320 = vmatprep.subr.mxu0 0.0
    %321 = vmatpush1.msra.mxu0 %v269
    %322 = vmatprep.subr.mxu0 0.0
    %323 = vmatpush2.msra.mxu0 0.0
    %324 = vmatprep.subr.mxu0 0.0
    %325 = vmatpush2.msra.mxu0 0.0
    %326 = vmatprep.subr.mxu0 0.0
    %327 = vmatpush2.msra.mxu0 0.0
    %328 = vmatprep.subr.mxu0 0.0
    %329 = vmatpush2.msra.mxu0 0.0
    %330 = vmatprep.subr.mxu0 0.0
    %331 = vmatpush2.msra.mxu0 0.0
    %332 = vmatprep.subr.mxu0 0.0
    %333 = vmatpush2.msra.mxu0 0.0
    %334 = vmatprep.subr.mxu0 0.0
    %335 = vmatpush2.msra.mxu0 0.0
    %336 = vmatprep.subr.mxu0 0.0
    %337 = vmatpush2.msra.mxu0 0.0
    %338 = vmatprep.subr.mxu0 0.0
    %339 = vmatpush2.msra.mxu0 0.0
    %340 = vmatprep.subr.mxu0 0.0
    %341 = vmatpush2.msra.mxu0 0.0
    %342 = vmatprep.subr.mxu0 0.0
    %343 = vmatpush2.msra.mxu0 0.0
    %344 = vmatprep.subr.mxu0 0.0
    %345 = vmatpush2.msra.mxu0 0.0
    %346 = vmatprep.subr.mxu0 0.0
    %347 = vmatpush2.msra.mxu0 0.0
    %348 = vmatprep.subr.mxu0 0.0
    %349 = vmatpush2.msra.mxu0 0.0
    %350 = vmatprep.subr.mxu0 0.0
    %351 = vmatpush2.msra.mxu0 0.0
    %352 = vmatprep.subr.mxu0 0.0
    %353 = vmatpush2.msra.mxu0 0.0
    %354 = vmatprep.mubr.f32.mxu0 0.0
    %355 = vmatmul.mubr.f32.gmra.mxu0 %v268
    %v356 = vpop.f32.mrf.mxu0
    %v357 = vadd.f32 %v289, %v356
    %v358 = vpop.f32.mrf.mxu0
    %359 = vdwg.mxu0
    %v360 = vmul.f32 %v357, 0.2
    %v361 = vmax.f32 %v357, %v360
    %362 = vadd.xlane.f32.xlu0 %v361
    %v363 = vpop.xlane.xlu0 %362
    %v364 = vmul.f32 %v361, %v361
    %365 = vadd.xlane.f32.xlu0 %v364
    %v366 = vpop.xlane.xlu0 %365
    %v367 = vmul.f32 %v363, 0.015625
    %v368 = vmul.f32 %v366, 0.015625
    %v369 = vmul.f32 %v367, %v367
    %v370 = vsub.f32 %v368, %v369
    %v371 = vsub.f32 %v361, %v367
    %v372 = vadd.f32 %v370, 1e-05
    %v373 = vrsqrt.pop %v372
    %v374 = vmul.f32 %v371, %v373
    %v375 = vld [vmem:[#allocation7 + $0x80] sm:$0xff]
    %v376 = vld [vmem:[#allocation7 + $0x88] sm:$0xff]
    %v377 = vld [vmem:[#allocation7 + $0x90] sm:$0xff]
    %v378 = vld [vmem:[#allocation7 + $0x98] sm:$0xff]
    %v379 = vld [vmem:[#allocation7 + $0xa0] sm:$0xff]
    %v380 = vld [vmem:[#allocation7 + $0xa8] sm:$0xff]
    %v381 = vld [vmem:[#allocation7 + $0xb0] sm:$0xff]
    %v382 = vld [vmem:[#allocation7 + $0xb8] sm:$0xff]
    %v383 = vld [vmem:[#allocation7 + $0xc0] sm:$0xff]
    %v384 = vld [vmem:[#allocation7 + $0xc8] sm:$0xff]
    %v385 = vld [vmem:[#allocation7 + $0xd0] sm:$0xff]
    %v386 = vld [vmem:[#allocation7 + $0xd8] sm:$0xff]
    %v387 = vld [vmem:[#allocation7 + $0xe0] sm:$0xff]
    %v388 = vld [vmem:[#allocation7 + $0xe8] sm:$0xff]
    %v389 = vld [vmem:[#allocation7 + $0xf0] sm:$0xff]
    %v390 = vld [vmem:[#allocation7 + $0xf8] sm:$0xff]
    %v391 = vld [vmem:[#allocation7 + $0x102] sm:$0x1]
    %v392 = vlaneseq
    %v393 = vshrl.u32 %v392, 7
    %v394 = vsub.s32 0, %v393
    %v395 = vrot.slane %v391, %v394
    %396 = vmatprep.subr.mxu0 0.0
    %397 = vmatpush1.msra.mxu0 %v390
    %398 = vmatprep.subr.mxu0 0.0
    %399 = vmatpush1.msra.mxu0 %v389
    %400 = vmatprep.subr.mxu0 0.0
    %401 = vmatpush1.msra.mxu0 %v388
    %402 = vmatprep.subr.mxu0 0.0
    %403 = vmatpush1.msra.mxu0 %v387
    %404 = vmatprep.subr.mxu0 0.0
    %405 = vmatpush1.msra.mxu0 %v386
    %406 = vmatprep.subr.mxu0 0.0
    %407 = vmatpush1.msra.mxu0 %v385
    %408 = vmatprep.subr.mxu0 0.0
    %409 = vmatpush1.msra.mxu0 %v384
    %410 = vmatprep.subr.mxu0 0.0
    %411 = vmatpush1.msra.mxu0 %v383
    %412 = vmatprep.subr.mxu0 0.0
    %413 = vmatpush1.msra.mxu0 %v382
    %414 = vmatprep.subr.mxu0 0.0
    %415 = vmatpush1.msra.mxu0 %v381
    %416 = vmatprep.subr.mxu0 0.0
    %417 = vmatpush1.msra.mxu0 %v380
    %418 = vmatprep.subr.mxu0 0.0
    %419 = vmatpush1.msra.mxu0 %v379
    %420 = vmatprep.subr.mxu0 0.0
    %421 = vmatpush1.msra.mxu0 %v378
    %422 = vmatprep.subr.mxu0 0.0
    %423 = vmatpush1.msra.mxu0 %v377
    %424 = vmatprep.subr.mxu0 0.0
    %425 = vmatpush1.msra.mxu0 %v376
    %426 = vmatprep.subr.mxu0 0.0
    %427 = vmatpush1.msra.mxu0 %v375
    %428 = vmatprep.subr.mxu0 0.0
    %429 = vmatpush2.msra.mxu0 0.0
    %430 = vmatprep.subr.mxu0 0.0
    %431 = vmatpush2.msra.mxu0 0.0
    %432 = vmatprep.subr.mxu0 0.0
    %433 = vmatpush2.msra.mxu0 0.0
    %434 = vmatprep.subr.mxu0 0.0
    %435 = vmatpush2.msra.mxu0 0.0
    %436 = vmatprep.subr.mxu0 0.0
    %437 = vmatpush2.msra.mxu0 0.0
    %438 = vmatprep.subr.mxu0 0.0
    %439 = vmatpush2.msra.mxu0 0.0
    %440 = vmatprep.subr.mxu0 0.0
    %441 = vmatpush2.msra.mxu0 0.0
    %442 = vmatprep.subr.mxu0 0.0
    %443 = vmatpush2.msra.mxu0 0.0
    %444 = vmatprep.subr.mxu0 0.0
    %445 = vmatpush2.msra.mxu0 0.0
    %446 = vmatprep.subr.mxu0 0.0
    %447 = vmatpush2.msra.mxu0 0.0
    %448 = vmatprep.subr.mxu0 0.0
    %449 = vmatpush2.msra.mxu0 0.0
    %450 = vmatprep.subr.mxu0 0.0
    %451 = vmatpush2.msra.mxu0 0.0
    %452 = vmatprep.subr.mxu0 0.0
    %453 = vmatpush2.msra.mxu0 0.0
    %454 = vmatprep.subr.mxu0 0.0
    %455 = vmatpush2.msra.mxu0 0.0
    %456 = vmatprep.subr.mxu0 0.0
    %457 = vmatpush2.msra.mxu0 0.0
    %458 = vmatprep.subr.mxu0 0.0
    %459 = vmatpush2.msra.mxu0 0.0
    %460 = vmatprep.mubr.f32.mxu0 0.0
    %461 = vmatmul.mubr.f32.gmra.mxu0 %v374
    %v462 = vpop.f32.mrf.mxu0
    %v463 = vadd.f32 %v395, %v462
    %v464 = vpop.f32.mrf.mxu0
    %465 = vdwg.mxu0
    %466 = vmax.xlane.f32.xlu0 %v463
    %v467 = vpop.xlane.xlu0 %466
    %v468 = vsub.f32 %v463, %v467
    %v469 = vmul.f32 %v468, 1.442695
    %v470 = vpow.pop %v469
    %471 = vadd.xlane.f32.xlu0 %v470
    %v472 = vpop.xlane.xlu0 %471
    %v473 = vrcp.pop %v472
    %v474 = vmul.f32 %v470, %v473
    %475 = vst [vmem:[#allocation8] sm:$0xff] %v474
    // Predicated region
    $region26: #{tpu_custom_call.1} parent=1 // pred_check
      _
    $region27: #{tpu_custom_call.1} parent=1 // pred_check_branch
      %477 = sbr.rel (0) target = $region29
    $region28: #{tpu_custom_call.1} parent=1 // pred_region
      %s479 = ssub.s32 128, 128
      %480 = vsyncadd [#allocation4], %s479
      %s482 = sshll.u32 [#allocation8], 4
      %s483 = int_to_ptr.vmem [resolvable:$true] %s482
      %485 = dma.vmem_to_hbm [thread:$0]  %s483, 128, %s3, [#allocation4]
    $region29: #{tpu_custom_call.1} parent=1 // pred_fallthru
      _
    // Predicated region
    $region30: #{tpu_custom_call.1} parent=1 // pred_check
      _
    $region31: #{tpu_custom_call.1} parent=1 // pred_check_branch
      %487 = sbr.rel (0) target = $region33
    $region32: #{tpu_custom_call.1} parent=1 // pred_region
      %488 = dma.done [#allocation4], 128
    $region33: #{tpu_custom_call.1} parent=1 // pred_fallthru
      _
    %489 = vsyncpa [#allocation3], 1
    %490 = vsyncpa [#allocation6], 1
    %491 = vsyncpa [#allocation4], 1

</llo_original>
